<compile_context>
chip_gen: v5e
topology: v5e:2x2
jax: 0.10.0
libtpu: 0.0.40
codegen_flags: <defaults>
</compile_context>

<pallas_src>
import functools

import jax
import jax.numpy as jnp
from jax.experimental import pallas as pl
from jax.experimental.pallas import tpu as pltpu


HIDDEN = 200        # logical hidden size (matches the PyTorch module)
HIDDEN_PAD = 256    # padded hidden size: lane-dense multiple of 128
SUBLANE = 16        # bf16 sublane packing granularity
TB_MAX = 2048       # max batch tile (amortizes per-grid-step overhead)


def _round_up(n: int, m: int) -> int:
    return ((n + m - 1) // m) * m


def _cdiv(a: int, b: int) -> int:
    return -(-a // b)


def _choose_tb(batch_eff: int) -> int:
    """Batch tile: as large as possible, but always >= 2 grid steps (v7x
    megacore) once the batch is big enough to split."""
    tb = min(TB_MAX, batch_eff)
    if tb == batch_eff and batch_eff >= 2 * SUBLANE:
        tb = _round_up(_cdiv(batch_eff, 2), SUBLANE)
    return max(8, tb)


def _choose_chunks(tb: int) -> int:
    """Independent row chunks per tile so EUP (tanh) and MXU (matmul) overlap."""
    for n in (4, 2):
        if tb % n == 0 and (tb // n) % 8 == 0 and tb // n >= 128:
            return n
    return 1


def mlp_kernel(x_ref, w1_ref, b1_ref, w2_ref, b2_ref, w3_ref, b3_ref, o_ref,
               *, n_chunks, chunk_rows):
    """One batch tile: three bf16 MXU matmuls (f32 accumulation) + tanh,
    processed as `n_chunks` independent row chunks (static unroll)."""
    w1 = w1_ref[...]
    b1 = b1_ref[...]
    w2 = w2_ref[...]
    b2 = b2_ref[...]
    w3 = w3_ref[...]
    b3 = b3_ref[...]

    for c in range(n_chunks):                    # static unroll -> MXU/EUP interleave
        r = c * chunk_rows
        x = x_ref[pl.ds(r, chunk_rows), :].astype(jnp.bfloat16)

        # Layer 1: (chunk, L) @ (L, 256), f32 accumulate; bias + tanh in bf16.
        h = jnp.dot(x, w1, preferred_element_type=jnp.float32)
        h = jnp.tanh(h.astype(jnp.bfloat16) + b1)

        # Layer 2: (chunk, 256) @ (256, 256).
        h = jnp.dot(h, w2, preferred_element_type=jnp.float32)
        h = jnp.tanh(h.astype(jnp.bfloat16) + b2)

        # Layer 3: (chunk, 256) @ (256, out_dim); out_dim is tiny, so keep
        # bias + tanh in f32 for accuracy, store narrow bf16 output.
        h = jnp.dot(h, w3, preferred_element_type=jnp.float32)
        o_ref[pl.ds(r, chunk_rows), :] = jnp.tanh(h + b3).astype(o_ref.dtype)


def prepare_params(params):
    """Pad hidden dim to 256 and cast matmul operands / hidden biases to bf16.

    Weights are stored pre-transposed as (in_features, out_features).
    Zero padding is exact: padded hidden columns compute tanh(0) = 0 and feed
    zero weight rows of the next layer, contributing nothing to real outputs.
    """
    latent = params["w1"].shape[0]
    out_dim = params["w3"].shape[1]

    def pad2(a, rows, cols):
        return jnp.pad(a, ((0, rows - a.shape[0]), (0, cols - a.shape[1])))

    return {
        "w1": pad2(params["w1"], latent, HIDDEN_PAD).astype(jnp.bfloat16),
        "b1": pad2(params["b1"], 1, HIDDEN_PAD).astype(jnp.bfloat16),
        "w2": pad2(params["w2"], HIDDEN_PAD, HIDDEN_PAD).astype(jnp.bfloat16),
        "b2": pad2(params["b2"], 1, HIDDEN_PAD).astype(jnp.bfloat16),
        "w3": pad2(params["w3"], HIDDEN_PAD, out_dim).astype(jnp.bfloat16),
        "b3": params["b3"].astype(jnp.float32),   # (1, out_dim), last layer stays f32
    }


@jax.jit
def simple_model_forward(x, prepped):
    """x: (batch, latent_dim) f32. prepped: padded/bf16 params from prepare_params.
    Returns (batch, out_dim) bf16 (tanh output in [-1, 1])."""
    batch, latent = x.shape
    out_dim = prepped["w3"].shape[1]
    w1, b1 = prepped["w1"], prepped["b1"]
    w2, b2 = prepped["w2"], prepped["b2"]
    w3, b3 = prepped["w3"], prepped["b3"]

    # x goes straight in as f32 (cast to bf16 in-kernel). Pad the batch only
    # when it isn't a multiple of 8; ragged last grid block is otherwise fine
    # (padded rows are masked off on the output writeback).
    batch_eff = _round_up(batch, 8)
    x_in = x if batch_eff == batch else jnp.pad(x, ((0, batch_eff - batch), (0, 0)))

    tb = _choose_tb(batch_eff)
    n_chunks = _choose_chunks(tb)
    grid = (_cdiv(batch_eff, tb),)

    kernel = functools.partial(mlp_kernel, n_chunks=n_chunks,
                               chunk_rows=tb // n_chunks)

    # Weights/biases: constant index_map -> stay VMEM-resident across grid steps.
    # TODO(synk): pipeline_mode=pl.Buffered(1) would drop the redundant second
    # buffer (~0.25 MB of params); left at the default for compile safety.
    resident = lambda a: pl.BlockSpec(a.shape, lambda i: (0, 0))

    flops = 2 * batch_eff * (latent * HIDDEN_PAD
                             + HIDDEN_PAD * HIDDEN_PAD
                             + HIDDEN_PAD * out_dim)
    transcendentals = batch_eff * (2 * HIDDEN_PAD + out_dim)
    bytes_accessed = (
        x_in.size * 4
        + (w1.size + b1.size + w2.size + b2.size + w3.size) * 2
        + b3.size * 4
        + batch_eff * out_dim * 2
    )

    out = pl.pallas_call(
        kernel,
        out_shape=jax.ShapeDtypeStruct((batch_eff, out_dim), jnp.bfloat16),
        grid=grid,
        in_specs=[
            pl.BlockSpec((tb, latent), lambda i: (i, 0)),
            resident(w1), resident(b1),
            resident(w2), resident(b2),
            resident(w3), resident(b3),
        ],
        out_specs=pl.BlockSpec((tb, out_dim), lambda i: (i, 0)),
        compiler_params=pltpu.CompilerParams(
            dimension_semantics=("parallel",),
        ),
        cost_estimate=pl.CostEstimate(
            flops=flops,
            transcendentals=transcendentals,
            bytes_accessed=bytes_accessed,
        ),
    )(x_in, w1, b1, w2, b2, w3, b3)

    return out if batch_eff == batch else out[:batch]


def init_params(key, latent_dim, output_dim, hidden=HIDDEN):
    """Deterministic init mimicking PyTorch nn.Linear default:
    U(-1/sqrt(fan_in), 1/sqrt(fan_in)). Weights stored transposed: (in, out)."""
    keys = jax.random.split(key, 6)

    def lin(kw, kb, fan_in, fan_out):
        bound = 1.0 / jnp.sqrt(fan_in)
        w = jax.random.uniform(kw, (fan_in, fan_out), jnp.float32, -bound, bound)
        b = jax.random.uniform(kb, (1, fan_out), jnp.float32, -bound, bound)
        return w, b

    w1, b1 = lin(keys[0], keys[1], latent_dim, hidden)
    w2, b2 = lin(keys[2], keys[3], hidden, hidden)
    w3, b3 = lin(keys[4], keys[5], hidden, output_dim)
    return {"w1": w1, "b1": b1, "w2": w2, "b2": b2, "w3": w3, "b3": b3}


def reference_forward(x, p):
    """Pure-JAX f32 reference of the PyTorch module."""
    h = jnp.tanh(x @ p["w1"] + p["b1"])
    h = jnp.tanh(h @ p["w2"] + p["b2"])
    return jnp.tanh(h @ p["w3"] + p["b3"])


if __name__ == "__main__":
    latent_dim = 32
    output_dim = 16
    batch = 8

    key = jax.random.PRNGKey(0)
    k_params, k_x = jax.random.split(key)
    params = init_params(k_params, latent_dim, output_dim)
    x = jax.random.normal(k_x, (batch, latent_dim), jnp.float32)

    prepped = prepare_params(params)
    out = simple_model_forward(x, prepped)
    out = jax.block_until_ready(out)

    ref = reference_forward(x, params)
    assert out.shape == (batch, output_dim), out.shape
    # bf16 matmul operands, bf16 hidden tanh and bf16 output storage:
    # tolerance relaxed accordingly (tanh output is bounded in [-1, 1]).
    err = float(jnp.max(jnp.abs(out.astype(jnp.float32) - ref)))
    assert jnp.allclose(out.astype(jnp.float32), ref, atol=4e-2, rtol=4e-2), err

    print("KERNEL_OK")
</pallas_src>

<mosaic_0001>
module attributes {stable_mosaic.version = 11 : i64} {
  func.func @mlp_kernel(%arg0: i32, %arg1: memref<8x32xf32, #tpu.memory_space<vmem>>, %arg2: memref<32x256xbf16, #tpu.memory_space<vmem>>, %arg3: memref<1x256xbf16, #tpu.memory_space<vmem>>, %arg4: memref<256x256xbf16, #tpu.memory_space<vmem>>, %arg5: memref<1x256xbf16, #tpu.memory_space<vmem>>, %arg6: memref<256x16xbf16, #tpu.memory_space<vmem>>, %arg7: memref<1x16xf32, #tpu.memory_space<vmem>>, %arg8: memref<8x16xbf16, #tpu.memory_space<vmem>>) attributes {dimension_semantics = [#tpu.dimension_semantics<parallel>], iteration_bounds = array<i64: 1>, scalar_prefetch = 0 : i64, scratch_operands = 0 : i64, tpu.core_type = #tpu.core_type<tc>, window_params = [{transform_indices = @transform_0, window_bounds = array<i64: 8, 32>}, {pipeline_mode = #tpu.pipeline_mode<synchronous>, transform_indices = @transform_1, window_bounds = array<i64: 32, 256>}, {pipeline_mode = #tpu.pipeline_mode<synchronous>, transform_indices = @transform_2, window_bounds = array<i64: 1, 256>}, {pipeline_mode = #tpu.pipeline_mode<synchronous>, transform_indices = @transform_3, window_bounds = array<i64: 256, 256>}, {pipeline_mode = #tpu.pipeline_mode<synchronous>, transform_indices = @transform_4, window_bounds = array<i64: 1, 256>}, {pipeline_mode = #tpu.pipeline_mode<synchronous>, transform_indices = @transform_5, window_bounds = array<i64: 256, 16>}, {pipeline_mode = #tpu.pipeline_mode<synchronous>, transform_indices = @transform_6, window_bounds = array<i64: 1, 16>}, {transform_indices = @transform_7, window_bounds = array<i64: 8, 16>}]} {
    %c0 = arith.constant 0 : index
    %c0_0 = arith.constant 0 : index
    %0 = vector.load %arg2[%c0, %c0_0] : memref<32x256xbf16, #tpu.memory_space<vmem>>, vector<32x256xbf16>
    %c0_1 = arith.constant 0 : index
    %c0_2 = arith.constant 0 : index
    %1 = vector.load %arg3[%c0_1, %c0_2] : memref<1x256xbf16, #tpu.memory_space<vmem>>, vector<1x256xbf16>
    %c0_3 = arith.constant 0 : index
    %c0_4 = arith.constant 0 : index
    %2 = vector.load %arg4[%c0_3, %c0_4] : memref<256x256xbf16, #tpu.memory_space<vmem>>, vector<256x256xbf16>
    %c0_5 = arith.constant 0 : index
    %c0_6 = arith.constant 0 : index
    %3 = vector.load %arg5[%c0_5, %c0_6] : memref<1x256xbf16, #tpu.memory_space<vmem>>, vector<1x256xbf16>
    %c0_7 = arith.constant 0 : index
    %c0_8 = arith.constant 0 : index
    %4 = vector.load %arg6[%c0_7, %c0_8] : memref<256x16xbf16, #tpu.memory_space<vmem>>, vector<256x16xbf16>
    %c0_9 = arith.constant 0 : index
    %c0_10 = arith.constant 0 : index
    %5 = vector.load %arg7[%c0_9, %c0_10] : memref<1x16xf32, #tpu.memory_space<vmem>>, vector<1x16xf32>
    %c0_11 = arith.constant 0 : index
    %c0_12 = arith.constant 0 : index
    %6 = vector.load %arg1[%c0_11, %c0_12] : memref<8x32xf32, #tpu.memory_space<vmem>>, vector<8x32xf32>
    %7 = arith.truncf %6 : vector<8x32xf32> to vector<8x32xbf16>
    %cst = arith.constant dense<0.000000e+00> : vector<8x256xf32>
    %8 = tpu.matmul %7, %0, %cst {dimension_numbers = #tpu.dot_dimension_numbers<[1], [0], [0], [1], [0, 0, 1, 1], [], []>} : vector<8x32xbf16>, vector<32x256xbf16>, vector<8x256xf32> -> vector<8x256xf32>
    %9 = arith.truncf %8 : vector<8x256xf32> to vector<8x256xbf16>
    %10 = vector.broadcast %1 : vector<1x256xbf16> to vector<8x256xbf16>
    %11 = arith.addf %9, %10 : vector<8x256xbf16>
    %12 = math.tanh %11 : vector<8x256xbf16>
    %cst_13 = arith.constant dense<0.000000e+00> : vector<8x256xf32>
    %13 = tpu.matmul %12, %2, %cst_13 {dimension_numbers = #tpu.dot_dimension_numbers<[1], [0], [0], [1], [0, 0, 1, 1], [], []>} : vector<8x256xbf16>, vector<256x256xbf16>, vector<8x256xf32> -> vector<8x256xf32>
    %14 = arith.truncf %13 : vector<8x256xf32> to vector<8x256xbf16>
    %15 = vector.broadcast %3 : vector<1x256xbf16> to vector<8x256xbf16>
    %16 = arith.addf %14, %15 : vector<8x256xbf16>
    %17 = math.tanh %16 : vector<8x256xbf16>
    %cst_14 = arith.constant dense<0.000000e+00> : vector<8x16xf32>
    %18 = tpu.matmul %17, %4, %cst_14 {dimension_numbers = #tpu.dot_dimension_numbers<[1], [0], [0], [1], [0, 0, 1, 1], [], []>} : vector<8x256xbf16>, vector<256x16xbf16>, vector<8x16xf32> -> vector<8x16xf32>
    %19 = vector.broadcast %5 : vector<1x16xf32> to vector<8x16xf32>
    %20 = arith.addf %18, %19 : vector<8x16xf32>
    %21 = math.tanh %20 : vector<8x16xf32>
    %22 = arith.truncf %21 : vector<8x16xf32> to vector<8x16xbf16>
    %c0_15 = arith.constant 0 : index
    %c0_16 = arith.constant 0 : index
    %23 = vector.load %arg8[%c0_15, %c0_16] : memref<8x16xbf16, #tpu.memory_space<vmem>>, vector<8x16xbf16>
    tpu.vector_store %arg8[%c0_15, %c0_16], %22 {strides = array<i32>} : memref<8x16xbf16, #tpu.memory_space<vmem>>, vector<8x16xbf16>,
    return
  }
  func.func @transform_0(%arg0: i32) -> (i32, i32) {
    %c0_i32 = arith.constant 0 : i32
    %c0_i32_0 = arith.constant 0 : i32
    return %arg0, %c0_i32 : i32, i32
  }
  func.func @transform_1(%arg0: i32) -> (i32, i32) {
    %c0_i32 = arith.constant 0 : i32
    %c0_i32_0 = arith.constant 0 : i32
    %c0_i32_1 = arith.constant 0 : i32
    return %c0_i32, %c0_i32_0 : i32, i32
  }
  func.func @transform_2(%arg0: i32) -> (i32, i32) {
    %c0_i32 = arith.constant 0 : i32
    %c0_i32_0 = arith.constant 0 : i32
    %c0_i32_1 = arith.constant 0 : i32
    return %c0_i32, %c0_i32_0 : i32, i32
  }
  func.func @transform_3(%arg0: i32) -> (i32, i32) {
    %c0_i32 = arith.constant 0 : i32
    %c0_i32_0 = arith.constant 0 : i32
    %c0_i32_1 = arith.constant 0 : i32
    return %c0_i32, %c0_i32_0 : i32, i32
  }
  func.func @transform_4(%arg0: i32) -> (i32, i32) {
    %c0_i32 = arith.constant 0 : i32
    %c0_i32_0 = arith.constant 0 : i32
    %c0_i32_1 = arith.constant 0 : i32
    return %c0_i32, %c0_i32_0 : i32, i32
  }
  func.func @transform_5(%arg0: i32) -> (i32, i32) {
    %c0_i32 = arith.constant 0 : i32
    %c0_i32_0 = arith.constant 0 : i32
    %c0_i32_1 = arith.constant 0 : i32
    return %c0_i32, %c0_i32_0 : i32, i32
  }
  func.func @transform_6(%arg0: i32) -> (i32, i32) {
    %c0_i32 = arith.constant 0 : i32
    %c0_i32_0 = arith.constant 0 : i32
    %c0_i32_1 = arith.constant 0 : i32
    return %c0_i32, %c0_i32_0 : i32, i32
  }
  func.func @transform_7(%arg0: i32) -> (i32, i32) {
    %c0_i32 = arith.constant 0 : i32
    %c0_i32_0 = arith.constant 0 : i32
    return %arg0, %c0_i32 : i32, i32
  }
}

</mosaic_0001>

<llo_original>
// kernel: simple_model_forward.1
$region0: #{simple_model_forward.1}
  #allocation0 [shape = 'u32[]', space=smem, size = 0x4, offset = 0x4, fixed_abs, tag = 'smem constant byte address 0x4 - core index']
  #allocation1 [shape = 'u32[72,128]{1,0:T(1,128)}', space=vmem, size = 0x9000, scoped, tag = 'internal scratch']
  %s0 = inlined_call_operand.vmem [shape: f32[8,32], index: 0, kind: input, shape index: {}]
  %s1 = inlined_call_operand.vmem [shape: bf16[32,256], index: 1, kind: input, shape index: {}]
  %s2 = inlined_call_operand.vmem [shape: bf16[1,256], index: 2, kind: input, shape index: {}]
  %s3 = inlined_call_operand.hbm [shape: bf16[256,256], index: 3, kind: input, shape index: {}]
  %s4 = inlined_call_operand.vmem [shape: bf16[1,256], index: 4, kind: input, shape index: {}]
  %s5 = inlined_call_operand.vmem [shape: bf16[256,16], index: 5, kind: input, shape index: {}]
  %s6 = inlined_call_operand.vmem [shape: f32[1,16], index: 6, kind: input, shape index: {}]
  %s7 = inlined_call_operand.hbm [shape: bf16[8,16], index: 7, kind: output, shape index: {}]
  %s8 = sld [smem:[#allocation0]]
  $region42: #{simple_model_forward.1} parent=0
    _
  %s10 = ssub.s32 1, %s8
  %s11 = scalar_select 0, %s10, %s8
  $region1: #{simple_model_forward.1} parent=0
    #allocation2 [shape = 'u8[131072]{0}', space=vmem, size = 0x20000, scoped, tag = 'input window, operand 3, single buffered']
    #allocation3 [shape = 's32[1]{0}', space=sflag, size = 0x4, scoped, tag = 'scoped memory for simple_model_forward.1']
    #allocation4 [shape = 's32[1]{0}', space=sflag, size = 0x4, scoped, tag = 'scoped memory for simple_model_forward.1']
    #allocation5 [shape = 'u8[2048]{0}', space=vmem, size = 0x800, scoped, tag = 'output window, operand 0, single buffered']
    %12 = vsyncpa [#allocation3], 0
    %13 = vsyncpa [#allocation4], 0
    // Predicated region
    $region2: #{simple_model_forward.1} parent=1 // pred_check
      _
    $region3: #{simple_model_forward.1} parent=1 // pred_check_branch
      %15 = sbr.rel (0) target = $region5
    $region4: #{simple_model_forward.1} parent=1 // pred_region
      _
    $region5: #{simple_model_forward.1} parent=1 // pred_fallthru
      _
    // Predicated region
    $region6: #{simple_model_forward.1} parent=1 // pred_check
      _
    $region7: #{simple_model_forward.1} parent=1 // pred_check_branch
      %17 = sbr.rel (0) target = $region9
    $region8: #{simple_model_forward.1} parent=1 // pred_region
      _
    $region9: #{simple_model_forward.1} parent=1 // pred_fallthru
      _
    // Predicated region
    $region10: #{simple_model_forward.1} parent=1 // pred_check
      _
    $region11: #{simple_model_forward.1} parent=1 // pred_check_branch
      %19 = sbr.rel (0) target = $region13
    $region12: #{simple_model_forward.1} parent=1 // pred_region
      _
    $region13: #{simple_model_forward.1} parent=1 // pred_fallthru
      _
    // Predicated region
    $region14: #{simple_model_forward.1} parent=1 // pred_check
      _
    $region15: #{simple_model_forward.1} parent=1 // pred_check_branch
      %21 = sbr.rel (0) target = $region17
    $region16: #{simple_model_forward.1} parent=1 // pred_region
      %23 = vsyncadd [#allocation3], 0
      %s24 = sshll.u32 %s3, 4
      %s25 = int_to_ptr.hbm [resolvable:$true] %s24
      %s26 = sshll.u32 [#allocation2], 4
      %s27 = int_to_ptr.vmem [resolvable:$true] %s26
      %32 = dma.hbm_to_vmem [thread:$0]  %s25, 4096, %s27, [#allocation3], 128, 128, 8
    $region17: #{simple_model_forward.1} parent=1 // pred_fallthru
      _
    // Predicated region
    $region18: #{simple_model_forward.1} parent=1 // pred_check
      _
    $region19: #{simple_model_forward.1} parent=1 // pred_check_branch
      %34 = sbr.rel (0) target = $region21
    $region20: #{simple_model_forward.1} parent=1 // pred_region
      _
    $region21: #{simple_model_forward.1} parent=1 // pred_fallthru
      _
    // Predicated region
    $region22: #{simple_model_forward.1} parent=1 // pred_check
      _
    $region23: #{simple_model_forward.1} parent=1 // pred_check_branch
      %36 = sbr.rel (0) target = $region25
    $region24: #{simple_model_forward.1} parent=1 // pred_region
      _
    $region25: #{simple_model_forward.1} parent=1 // pred_fallthru
      _
    // Predicated region
    $region26: #{simple_model_forward.1} parent=1 // pred_check
      _
    $region27: #{simple_model_forward.1} parent=1 // pred_check_branch
      %38 = sbr.rel (0) target = $region29
    $region28: #{simple_model_forward.1} parent=1 // pred_region
      _
    $region29: #{simple_model_forward.1} parent=1 // pred_fallthru
      _
    // Predicated region
    $region30: #{simple_model_forward.1} parent=1 // pred_check
      _
    $region31: #{simple_model_forward.1} parent=1 // pred_check_branch
      %40 = sbr.rel (0) target = $region33
    $region32: #{simple_model_forward.1} parent=1 // pred_region
      %42 = dma.done [#allocation3], 4096
    $region33: #{simple_model_forward.1} parent=1 // pred_fallthru
      _
    %v44 = vld [vmem:[%s1] sm:$0xff]
    %v45 = vld [vmem:[%s1 + $0x8] sm:$0xff]
    %v46 = vld [vmem:[%s1 + $0x10] sm:$0xff]
    %v47 = vld [vmem:[%s1 + $0x18] sm:$0xff]
    %v48 = vld [vmem:[%s2] sm:$0x3]
    %v49 = vld [vmem:[#allocation2] sm:$0xff]
    %v50 = vld [vmem:[#allocation2 + $0x8] sm:$0xff]
    %v51 = vld [vmem:[#allocation2 + $0x10] sm:$0xff]
    %v52 = vld [vmem:[#allocation2 + $0x18] sm:$0xff]
    %v53 = vld [vmem:[#allocation2 + $0x20] sm:$0xff]
    %v54 = vld [vmem:[#allocation2 + $0x28] sm:$0xff]
    %v55 = vld [vmem:[#allocation2 + $0x30] sm:$0xff]
    %v56 = vld [vmem:[#allocation2 + $0x38] sm:$0xff]
    %v57 = vld [vmem:[#allocation2 + $0x40] sm:$0xff]
    %v58 = vld [vmem:[#allocation2 + $0x48] sm:$0xff]
    %v59 = vld [vmem:[#allocation2 + $0x50] sm:$0xff]
    %v60 = vld [vmem:[#allocation2 + $0x58] sm:$0xff]
    %v61 = vld [vmem:[#allocation2 + $0x60] sm:$0xff]
    %v62 = vld [vmem:[#allocation2 + $0x68] sm:$0xff]
    %v63 = vld [vmem:[#allocation2 + $0x70] sm:$0xff]
    %v64 = vld [vmem:[#allocation2 + $0x78] sm:$0xff]
    %v65 = vld [vmem:[#allocation2 + $0x80] sm:$0xff]
    %v66 = vld [vmem:[#allocation2 + $0x88] sm:$0xff]
    %v67 = vld [vmem:[#allocation2 + $0x90] sm:$0xff]
    %v68 = vld [vmem:[#allocation2 + $0x98] sm:$0xff]
    %v69 = vld [vmem:[#allocation2 + $0xa0] sm:$0xff]
    %v70 = vld [vmem:[#allocation2 + $0xa8] sm:$0xff]
    %v71 = vld [vmem:[#allocation2 + $0xb0] sm:$0xff]
    %v72 = vld [vmem:[#allocation2 + $0xb8] sm:$0xff]
    %v73 = vld [vmem:[#allocation2 + $0xc0] sm:$0xff]
    %v74 = vld [vmem:[#allocation2 + $0xc8] sm:$0xff]
    %v75 = vld [vmem:[#allocation2 + $0xd0] sm:$0xff]
    %v76 = vld [vmem:[#allocation2 + $0xd8] sm:$0xff]
    %v77 = vld [vmem:[#allocation2 + $0xe0] sm:$0xff]
    %v78 = vld [vmem:[#allocation2 + $0xe8] sm:$0xff]
    %v79 = vld [vmem:[#allocation2 + $0xf0] sm:$0xff]
    %v80 = vld [vmem:[#allocation2 + $0xf8] sm:$0xff]
    %v81 = vld [vmem:[%s4] sm:$0x3]
    %v82 = vld [vmem:[%s5] sm:$0xf]
    %v83 = vld [vmem:[%s5 + $0x4] sm:$0xf]
    %v84 = vld [vmem:[%s5 + $0x8] sm:$0xf]
    %v85 = vld [vmem:[%s5 + $0xc] sm:$0xf]
    %v86 = vld [vmem:[%s5 + $0x10] sm:$0xf]
    %v87 = vld [vmem:[%s5 + $0x14] sm:$0xf]
    %v88 = vld [vmem:[%s5 + $0x18] sm:$0xf]
    %v89 = vld [vmem:[%s5 + $0x1c] sm:$0xf]
    %v90 = vld [vmem:[%s5 + $0x20] sm:$0xf]
    %v91 = vld [vmem:[%s5 + $0x24] sm:$0xf]
    %v92 = vld [vmem:[%s5 + $0x28] sm:$0xf]
    %v93 = vld [vmem:[%s5 + $0x2c] sm:$0xf]
    %v94 = vld [vmem:[%s5 + $0x30] sm:$0xf]
    %v95 = vld [vmem:[%s5 + $0x34] sm:$0xf]
    %v96 = vld [vmem:[%s5 + $0x38] sm:$0xf]
    %v97 = vld [vmem:[%s5 + $0x3c] sm:$0xf]
    %v98 = vld [vmem:[%s5 + $0x40] sm:$0xf]
    %v99 = vld [vmem:[%s5 + $0x44] sm:$0xf]
    %v100 = vld [vmem:[%s5 + $0x48] sm:$0xf]
    %v101 = vld [vmem:[%s5 + $0x4c] sm:$0xf]
    %v102 = vld [vmem:[%s5 + $0x50] sm:$0xf]
    %v103 = vld [vmem:[%s5 + $0x54] sm:$0xf]
    %v104 = vld [vmem:[%s5 + $0x58] sm:$0xf]
    %v105 = vld [vmem:[%s5 + $0x5c] sm:$0xf]
    %v106 = vld [vmem:[%s5 + $0x60] sm:$0xf]
    %v107 = vld [vmem:[%s5 + $0x64] sm:$0xf]
    %v108 = vld [vmem:[%s5 + $0x68] sm:$0xf]
    %v109 = vld [vmem:[%s5 + $0x6c] sm:$0xf]
    %v110 = vld [vmem:[%s5 + $0x70] sm:$0xf]
    %v111 = vld [vmem:[%s5 + $0x74] sm:$0xf]
    %v112 = vld [vmem:[%s5 + $0x78] sm:$0xf]
    %v113 = vld [vmem:[%s5 + $0x7c] sm:$0xf]
    %v114 = vld [vmem:[%s6] sm:$0x1]
    %v115 = vld [vmem:[%s0] sm:$0xff]
    %v116 = vpack.c.bf16 %v115, %v115
    %v121 = vunpack.c.l.b16 %v44
    %v122 = vunpack.c.h.b16 %v44
    %v123 = vunpack.c.l.b16 %v45
    %v124 = vunpack.c.h.b16 %v45
    %v125 = vunpack.c.l.b16 %v46
    %v126 = vunpack.c.h.b16 %v46
    %v127 = vunpack.c.l.b16 %v47
    %v128 = vunpack.c.h.b16 %v47
    %v129 = vpack.c.b16 %v123, %v121
    %v130 = vpack.c.b16 %v124, %v122
    %v131 = vpack.c.b16 %v127, %v125
    %v132 = vpack.c.b16 %v128, %v126
    %vm137 = vcmask 261120
    %v139 = vsel %vm137, %v116, 0
    %141 = vmatpush.bf16.msra.mxu0 0
    %142 = vmatpush.bf16.msra.mxu0 0
    %143 = vmatpush.bf16.msra.mxu0 0
    %144 = vmatpush.bf16.msra.mxu0 0
    %145 = vmatpush.bf16.msra.mxu0 0
    %146 = vmatpush.bf16.msra.mxu0 0
    %147 = vmatpush.bf16.msra.mxu0 %v131
    %148 = vmatpush.bf16.msra.mxu0 %v129
    %149 = vmatmul.bf16.gmra.mxu0 %v139
    %v150 = vpop.f32.mrf.mxu0
    %v151 = vadd.f32 0.0, %v150
    %v152 = vpop.f32.mrf.mxu0
    %153 = vdwg.mxu0
    %154 = vmatpush.bf16.msra.mxu0 0
    %155 = vmatpush.bf16.msra.mxu0 0
    %156 = vmatpush.bf16.msra.mxu0 0
    %157 = vmatpush.bf16.msra.mxu0 0
    %158 = vmatpush.bf16.msra.mxu0 0
    %159 = vmatpush.bf16.msra.mxu0 0
    %160 = vmatpush.bf16.msra.mxu0 %v132
    %161 = vmatpush.bf16.msra.mxu0 %v130
    %162 = vmatmul.bf16.gmra.mxu0 %v139
    %v163 = vpop.f32.mrf.mxu0
    %v164 = vadd.f32 0.0, %v163
    %v165 = vpop.f32.mrf.mxu0
    %166 = vdwg.mxu0
    %v167 = vpack.c.bf16 %v164, %v151
    %169 = vst [vmem:[#allocation1] ss:$9 sm:$0xff] %v48
    %v170 = vld [vmem:[#allocation1] sm:$0xff]
    %v171 = vld [vmem:[#allocation1 + $0x9] sm:$0xff]
    %v172 = vpack.i.b16 %v170, %v170
    %v174 = vperm.slane %v172, 0
    %v175 = vpack.i.b16 %v171, %v171
    %v177 = vperm.slane %v175, 0
    %v178 = vunpack.c.l.bf16 %v167
    %v179 = vunpack.c.h.bf16 %v167
    %v180 = vunpack.c.l.bf16 %v174
    %v181 = vunpack.c.l.bf16 %v177
    %v182 = vadd.f32 %v178, %v180
    %v183 = vadd.f32 %v179, %v181
    %v184 = vpack.c.bf16 %v182, %v182
    %v185 = vpack.c.bf16 %v183, %v183
    %v186 = vunpack.c.l.bf16 %v184
    %v187 = vunpack.c.l.bf16 %v185
    %v188 = vtanh.pop %v186
    %v189 = vtanh.pop %v187
    %v190 = vpack.c.bf16 %v188, %v188
    %v191 = vpack.c.bf16 %v189, %v189
    %v224 = vunpack.c.l.b16 %v49
    %v225 = vunpack.c.h.b16 %v49
    %v226 = vunpack.c.l.b16 %v50
    %v227 = vunpack.c.h.b16 %v50
    %v228 = vunpack.c.l.b16 %v51
    %v229 = vunpack.c.h.b16 %v51
    %v230 = vunpack.c.l.b16 %v52
    %v231 = vunpack.c.h.b16 %v52
    %v232 = vunpack.c.l.b16 %v53
    %v233 = vunpack.c.h.b16 %v53
    %v234 = vunpack.c.l.b16 %v54
    %v235 = vunpack.c.h.b16 %v54
    %v236 = vunpack.c.l.b16 %v55
    %v237 = vunpack.c.h.b16 %v55
    %v238 = vunpack.c.l.b16 %v56
    %v239 = vunpack.c.h.b16 %v56
    %v240 = vunpack.c.l.b16 %v57
    %v241 = vunpack.c.h.b16 %v57
    %v242 = vunpack.c.l.b16 %v58
    %v243 = vunpack.c.h.b16 %v58
    %v244 = vunpack.c.l.b16 %v59
    %v245 = vunpack.c.h.b16 %v59
    %v246 = vunpack.c.l.b16 %v60
    %v247 = vunpack.c.h.b16 %v60
    %v248 = vunpack.c.l.b16 %v61
    %v249 = vunpack.c.h.b16 %v61
    %v250 = vunpack.c.l.b16 %v62
    %v251 = vunpack.c.h.b16 %v62
    %v252 = vunpack.c.l.b16 %v63
    %v253 = vunpack.c.h.b16 %v63
    %v254 = vunpack.c.l.b16 %v64
    %v255 = vunpack.c.h.b16 %v64
    %v256 = vunpack.c.l.b16 %v65
    %v257 = vunpack.c.h.b16 %v65
    %v258 = vunpack.c.l.b16 %v66
    %v259 = vunpack.c.h.b16 %v66
    %v260 = vunpack.c.l.b16 %v67
    %v261 = vunpack.c.h.b16 %v67
    %v262 = vunpack.c.l.b16 %v68
    %v263 = vunpack.c.h.b16 %v68
    %v264 = vunpack.c.l.b16 %v69
    %v265 = vunpack.c.h.b16 %v69
    %v266 = vunpack.c.l.b16 %v70
    %v267 = vunpack.c.h.b16 %v70
    %v268 = vunpack.c.l.b16 %v71
    %v269 = vunpack.c.h.b16 %v71
    %v270 = vunpack.c.l.b16 %v72
    %v271 = vunpack.c.h.b16 %v72
    %v272 = vunpack.c.l.b16 %v73
    %v273 = vunpack.c.h.b16 %v73
    %v274 = vunpack.c.l.b16 %v74
    %v275 = vunpack.c.h.b16 %v74
    %v276 = vunpack.c.l.b16 %v75
    %v277 = vunpack.c.h.b16 %v75
    %v278 = vunpack.c.l.b16 %v76
    %v279 = vunpack.c.h.b16 %v76
    %v280 = vunpack.c.l.b16 %v77
    %v281 = vunpack.c.h.b16 %v77
    %v282 = vunpack.c.l.b16 %v78
    %v283 = vunpack.c.h.b16 %v78
    %v284 = vunpack.c.l.b16 %v79
    %v285 = vunpack.c.h.b16 %v79
    %v286 = vunpack.c.l.b16 %v80
    %v287 = vunpack.c.h.b16 %v80
    %v288 = vpack.c.b16 %v226, %v224
    %v289 = vpack.c.b16 %v227, %v225
    %v290 = vpack.c.b16 %v230, %v228
    %v291 = vpack.c.b16 %v231, %v229
    %v292 = vpack.c.b16 %v234, %v232
    %v293 = vpack.c.b16 %v235, %v233
    %v294 = vpack.c.b16 %v238, %v236
    %v295 = vpack.c.b16 %v239, %v237
    %v296 = vpack.c.b16 %v242, %v240
    %v297 = vpack.c.b16 %v243, %v241
    %v298 = vpack.c.b16 %v246, %v244
    %v299 = vpack.c.b16 %v247, %v245
    %v300 = vpack.c.b16 %v250, %v248
    %v301 = vpack.c.b16 %v251, %v249
    %v302 = vpack.c.b16 %v254, %v252
    %v303 = vpack.c.b16 %v255, %v253
    %v304 = vpack.c.b16 %v258, %v256
    %v305 = vpack.c.b16 %v259, %v257
    %v306 = vpack.c.b16 %v262, %v260
    %v307 = vpack.c.b16 %v263, %v261
    %v308 = vpack.c.b16 %v266, %v264
    %v309 = vpack.c.b16 %v267, %v265
    %v310 = vpack.c.b16 %v270, %v268
    %v311 = vpack.c.b16 %v271, %v269
    %v312 = vpack.c.b16 %v274, %v272
    %v313 = vpack.c.b16 %v275, %v273
    %v314 = vpack.c.b16 %v278, %v276
    %v315 = vpack.c.b16 %v279, %v277
    %v316 = vpack.c.b16 %v282, %v280
    %v317 = vpack.c.b16 %v283, %v281
    %v318 = vpack.c.b16 %v286, %v284
    %v319 = vpack.c.b16 %v287, %v285
    %352 = vmatpush.bf16.msra.mxu0 %v302
    %353 = vmatpush.bf16.msra.mxu0 %v300
    %354 = vmatpush.bf16.msra.mxu0 %v298
    %355 = vmatpush.bf16.msra.mxu0 %v296
    %356 = vmatpush.bf16.msra.mxu0 %v294
    %357 = vmatpush.bf16.msra.mxu0 %v292
    %358 = vmatpush.bf16.msra.mxu0 %v290
    %359 = vmatpush.bf16.msra.mxu0 %v288
    %360 = vmatmul.bf16.gmra.mxu0 %v190
    %v361 = vpop.f32.mrf.mxu0
    %v362 = vadd.f32 0.0, %v361
    %v363 = vpop.f32.mrf.mxu0
    %364 = vdwg.mxu0
    %365 = vmatpush.bf16.msra.mxu0 %v318
    %366 = vmatpush.bf16.msra.mxu0 %v316
    %367 = vmatpush.bf16.msra.mxu0 %v314
    %368 = vmatpush.bf16.msra.mxu0 %v312
    %369 = vmatpush.bf16.msra.mxu0 %v310
    %370 = vmatpush.bf16.msra.mxu0 %v308
    %371 = vmatpush.bf16.msra.mxu0 %v306
    %372 = vmatpush.bf16.msra.mxu0 %v304
    %373 = vmatmul.bf16.gmra.mxu0 %v191
    %v374 = vpop.f32.mrf.mxu0
    %v375 = vadd.f32 %v362, %v374
    %v376 = vpop.f32.mrf.mxu0
    %377 = vdwg.mxu0
    %378 = vmatpush.bf16.msra.mxu0 %v303
    %379 = vmatpush.bf16.msra.mxu0 %v301
    %380 = vmatpush.bf16.msra.mxu0 %v299
    %381 = vmatpush.bf16.msra.mxu0 %v297
    %382 = vmatpush.bf16.msra.mxu0 %v295
    %383 = vmatpush.bf16.msra.mxu0 %v293
    %384 = vmatpush.bf16.msra.mxu0 %v291
    %385 = vmatpush.bf16.msra.mxu0 %v289
    %386 = vmatmul.bf16.gmra.mxu0 %v190
    %v387 = vpop.f32.mrf.mxu0
    %v388 = vadd.f32 0.0, %v387
    %v389 = vpop.f32.mrf.mxu0
    %390 = vdwg.mxu0
    %391 = vmatpush.bf16.msra.mxu0 %v319
    %392 = vmatpush.bf16.msra.mxu0 %v317
    %393 = vmatpush.bf16.msra.mxu0 %v315
    %394 = vmatpush.bf16.msra.mxu0 %v313
    %395 = vmatpush.bf16.msra.mxu0 %v311
    %396 = vmatpush.bf16.msra.mxu0 %v309
    %397 = vmatpush.bf16.msra.mxu0 %v307
    %398 = vmatpush.bf16.msra.mxu0 %v305
    %399 = vmatmul.bf16.gmra.mxu0 %v191
    %v400 = vpop.f32.mrf.mxu0
    %v401 = vadd.f32 %v388, %v400
    %v402 = vpop.f32.mrf.mxu0
    %403 = vdwg.mxu0
    %v404 = vpack.c.bf16 %v401, %v375
    %406 = vst [vmem:[#allocation1] ss:$9 sm:$0xff] %v81
    %v407 = vld [vmem:[#allocation1] sm:$0xff]
    %v408 = vld [vmem:[#allocation1 + $0x9] sm:$0xff]
    %v409 = vpack.i.b16 %v407, %v407
    %v411 = vperm.slane %v409, 0
    %v412 = vpack.i.b16 %v408, %v408
    %v414 = vperm.slane %v412, 0
    %v415 = vunpack.c.l.bf16 %v404
    %v416 = vunpack.c.h.bf16 %v404
    %v417 = vunpack.c.l.bf16 %v411
    %v418 = vunpack.c.l.bf16 %v414
    %v419 = vadd.f32 %v415, %v417
    %v420 = vadd.f32 %v416, %v418
    %v421 = vpack.c.bf16 %v419, %v419
    %v422 = vpack.c.bf16 %v420, %v420
    %v423 = vunpack.c.l.bf16 %v421
    %v424 = vunpack.c.l.bf16 %v422
    %v425 = vtanh.pop %v423
    %v426 = vtanh.pop %v424
    %v427 = vpack.c.bf16 %v425, %v425
    %v428 = vpack.c.bf16 %v426, %v426
    %v430 = vperm.slane %v114, 0
    %v464 = vunpack.c.l.b16 %v82
    %v465 = vunpack.c.l.b16 %v83
    %v466 = vunpack.c.l.b16 %v84
    %v467 = vunpack.c.l.b16 %v85
    %v468 = vunpack.c.l.b16 %v86
    %v469 = vunpack.c.l.b16 %v87
    %v470 = vunpack.c.l.b16 %v88
    %v471 = vunpack.c.l.b16 %v89
    %v472 = vunpack.c.l.b16 %v90
    %v473 = vunpack.c.l.b16 %v91
    %v474 = vunpack.c.l.b16 %v92
    %v475 = vunpack.c.l.b16 %v93
    %v476 = vunpack.c.l.b16 %v94
    %v477 = vunpack.c.l.b16 %v95
    %v478 = vunpack.c.l.b16 %v96
    %v479 = vunpack.c.l.b16 %v97
    %v480 = vunpack.c.l.b16 %v98
    %v481 = vunpack.c.l.b16 %v99
    %v482 = vunpack.c.l.b16 %v100
    %v483 = vunpack.c.l.b16 %v101
    %v484 = vunpack.c.l.b16 %v102
    %v485 = vunpack.c.l.b16 %v103
    %v486 = vunpack.c.l.b16 %v104
    %v487 = vunpack.c.l.b16 %v105
    %v488 = vunpack.c.l.b16 %v106
    %v489 = vunpack.c.l.b16 %v107
    %v490 = vunpack.c.l.b16 %v108
    %v491 = vunpack.c.l.b16 %v109
    %v492 = vunpack.c.l.b16 %v110
    %v493 = vunpack.c.l.b16 %v111
    %v494 = vunpack.c.l.b16 %v112
    %v495 = vunpack.c.l.b16 %v113
    %v496 = vpack.c.b16 %v465, %v464
    %v497 = vpack.c.b16 %v467, %v466
    %v498 = vpack.c.b16 %v469, %v468
    %v499 = vpack.c.b16 %v471, %v470
    %v500 = vpack.c.b16 %v473, %v472
    %v501 = vpack.c.b16 %v475, %v474
    %v502 = vpack.c.b16 %v477, %v476
    %v503 = vpack.c.b16 %v479, %v478
    %v504 = vpack.c.b16 %v481, %v480
    %v505 = vpack.c.b16 %v483, %v482
    %v506 = vpack.c.b16 %v485, %v484
    %v507 = vpack.c.b16 %v487, %v486
    %v508 = vpack.c.b16 %v489, %v488
    %v509 = vpack.c.b16 %v491, %v490
    %v510 = vpack.c.b16 %v493, %v492
    %v511 = vpack.c.b16 %v495, %v494
    %528 = vmatpush.bf16.msra.mxu0 %v503
    %529 = vmatpush.bf16.msra.mxu0 %v502
    %530 = vmatpush.bf16.msra.mxu0 %v501
    %531 = vmatpush.bf16.msra.mxu0 %v500
    %532 = vmatpush.bf16.msra.mxu0 %v499
    %533 = vmatpush.bf16.msra.mxu0 %v498
    %534 = vmatpush.bf16.msra.mxu0 %v497
    %535 = vmatpush.bf16.msra.mxu0 %v496
    %536 = vmatmul.bf16.gmra.mxu0 %v427
    %v537 = vpop.f32.mrf.mxu0
    %v538 = vadd.f32 %v430, %v537
    %v539 = vpop.f32.mrf.mxu0
    %540 = vdwg.mxu0
    %541 = vmatpush.bf16.msra.mxu0 %v511
    %542 = vmatpush.bf16.msra.mxu0 %v510
    %543 = vmatpush.bf16.msra.mxu0 %v509
    %544 = vmatpush.bf16.msra.mxu0 %v508
    %545 = vmatpush.bf16.msra.mxu0 %v507
    %546 = vmatpush.bf16.msra.mxu0 %v506
    %547 = vmatpush.bf16.msra.mxu0 %v505
    %548 = vmatpush.bf16.msra.mxu0 %v504
    %549 = vmatmul.bf16.gmra.mxu0 %v428
    %v550 = vpop.f32.mrf.mxu0
    %v551 = vadd.f32 %v538, %v550
    %v552 = vpop.f32.mrf.mxu0
    %553 = vdwg.mxu0
    %v554 = vtanh.pop %v551
    %v555 = vpack.c.bf16 %v554, %v554
    %vm556 = vcmask 125952
    %557 = vst.msk [vmem:[#allocation5] sm:$0xf] %vm556, %v555
    // Predicated region
    $region34: #{simple_model_forward.1} parent=1 // pred_check
      _
    $region35: #{simple_model_forward.1} parent=1 // pred_check_branch
      %559 = sbr.rel (0) target = $region37
    $region36: #{simple_model_forward.1} parent=1 // pred_region
      %561 = vsyncadd [#allocation4], 0
      %s563 = sshll.u32 [#allocation5], 4
      %s564 = int_to_ptr.vmem [resolvable:$true] %s563
      %s565 = sshll.u32 %s7, 4
      %s566 = int_to_ptr.hbm [resolvable:$true] %s565
      %568 = dma.vmem_to_hbm [thread:$0]  %s564, 64, %s566, [#allocation4]
    $region37: #{simple_model_forward.1} parent=1 // pred_fallthru
      _
    // Predicated region
    $region38: #{simple_model_forward.1} parent=1 // pred_check
      _
    $region39: #{simple_model_forward.1} parent=1 // pred_check_branch
      %570 = sbr.rel (0) target = $region41
    $region40: #{simple_model_forward.1} parent=1 // pred_region
      %572 = dma.done [#allocation4], 64
    $region41: #{simple_model_forward.1} parent=1 // pred_fallthru
      _
    %573 = vsyncpa [#allocation3], 1
    %574 = vsyncpa [#allocation4], 1

</llo_original>
